<compile_context>
chip_gen: v7x
topology: tpu7x:2x2x1
jax: 0.10.0
libtpu: 0.0.40
codegen_flags: <defaults>
</compile_context>

<pallas_src>
import jax
import jax.numpy as jnp
from jax.experimental import pallas as pl
from jax.experimental.pallas import tpu as pltpu


def _qvalue_kernel(x_ref, a_ref, w1s_ref, w1a_ref, b1_ref,
                   w2_ref, b2_ref, w3r_ref, b3_ref, out_ref):
    mm_dtype = w1s_ref.dtype            # matmul operand dtype (f32 or bf16)

    x = x_ref[...].astype(mm_dtype)     # [tb, S]
    a = a_ref[...].astype(mm_dtype)     # [tb, A]

    # fc1: split matmul replaces the host-side concat; accumulate in f32.
    h1 = jnp.dot(x, w1s_ref[...], preferred_element_type=jnp.float32)
    h1 = h1 + jnp.dot(a, w1a_ref[...], preferred_element_type=jnp.float32)
    h1 = jnp.maximum(h1 + b1_ref[...], 0.0)                     # [tb, H] f32

    # fc2 + bias + ReLU.
    h2 = jnp.dot(h1.astype(mm_dtype), w2_ref[...],
                 preferred_element_type=jnp.float32)
    h2 = jnp.maximum(h2 + b2_ref[...], 0.0)                     # [tb, H] f32

    # fc_out: N=1 -> VPU multiply + XLU lane-reduction (frees the MXU).
    w3_row = w3r_ref[...].astype(jnp.float32)                   # [1, H]
    q = jnp.sum(h2 * w3_row, axis=-1, keepdims=True) + b3_ref[0, 0]
    out_ref[...] = q.astype(out_ref.dtype)                      # [tb, 1]


def qvalue_forward(x, a, params, *, matmul_dtype=jnp.float32, max_block_b=256):
    """x: [B, state_dim], a: [B, action_dim] -> q: [B, 1] float32."""
    w1, b1, w2, b2, w3, b3 = params
    batch, state_dim = x.shape
    action_dim = a.shape[1]
    hidden = w1.shape[1]

    # Layout plumbing done once in the wrapper.
    w1_s = w1[:state_dim].astype(matmul_dtype)       # [S, H]
    w1_a = w1[state_dim:].astype(matmul_dtype)       # [A, H]
    w2_c = w2.astype(matmul_dtype)                   # [H, H]
    w3_row = jnp.transpose(w3)                       # [1, H], stays f32
    b3_s = jnp.reshape(b3, (1, 1))                   # scalar -> SMEM

    x_c = x.astype(matmul_dtype)
    a_c = a.astype(matmul_dtype)

    # Pad batch to a sublane multiple (8) and choose the batch tile.
    b8 = -(-batch // 8) * 8
    if b8 <= max_block_b:
        tile_b, padded = b8, b8
    else:
        tile_b = max_block_b
        padded = -(-b8 // max_block_b) * max_block_b
    if padded != batch:
        pad = padded - batch
        x_c = jnp.pad(x_c, ((0, pad), (0, 0)))
        a_c = jnp.pad(a_c, ((0, pad), (0, 0)))

    grid = (padded // tile_b,)

    # Weights/biases use a constant block index -> resident across grid steps.
    resident = lambda shape: pl.BlockSpec(shape, lambda i: (0, 0))

    out = pl.pallas_call(
        _qvalue_kernel,
        out_shape=jax.ShapeDtypeStruct((padded, 1), jnp.float32),
        grid=grid,
        in_specs=[
            pl.BlockSpec((tile_b, state_dim), lambda i: (i, 0)),    # x tile
            pl.BlockSpec((tile_b, action_dim), lambda i: (i, 0)),   # a tile
            resident(w1_s.shape),                                   # w1[:S]
            resident(w1_a.shape),                                   # w1[S:]
            resident((1, hidden)),                                  # b1
            resident((hidden, hidden)),                             # w2
            resident((1, hidden)),                                  # b2
            resident((1, hidden)),                                  # w3^T row
            pl.BlockSpec(memory_space=pltpu.MemorySpace.SMEM),      # b3 scalar
        ],
        out_specs=pl.BlockSpec((tile_b, 1), lambda i: (i, 0)),
        compiler_params=pltpu.CompilerParams(
            dimension_semantics=("parallel",)),
    )(x_c, a_c, w1_s, w1_a, b1, w2_c, b2, w3_row, b3_s)

    return out[:batch] if padded != batch else out


def init_params(key, state_dim, hidden_dim, action_dim):
    """torch.nn.Linear-style init (U(-1/sqrt(fan_in), 1/sqrt(fan_in))).
    Weights stored transposed vs torch: [in_features, out_features]."""
    in1 = state_dim + action_dim
    ks = jax.random.split(key, 6)

    def lin(kw, kb, fan_in, fan_out):
        bound = 1.0 / jnp.sqrt(jnp.float32(fan_in))
        w = jax.random.uniform(kw, (fan_in, fan_out), jnp.float32,
                               minval=-bound, maxval=bound)
        b = jax.random.uniform(kb, (1, fan_out), jnp.float32,
                               minval=-bound, maxval=bound)
        return w, b

    w1, b1 = lin(ks[0], ks[1], in1, hidden_dim)
    w2, b2 = lin(ks[2], ks[3], hidden_dim, hidden_dim)
    w3, b3 = lin(ks[4], ks[5], hidden_dim, 1)
    return (w1, b1, w2, b2, w3, b3)


if __name__ == "__main__":
    state_dim, action_dim, hidden_dim, batch = 4, 2, 32, 2

    key = jax.random.PRNGKey(0)
    k_params, k_x, k_a = jax.random.split(key, 3)

    params = init_params(k_params, state_dim, hidden_dim, action_dim)
    x = jax.random.normal(k_x, (batch, state_dim), jnp.float32)
    a = jax.random.normal(k_a, (batch, action_dim), jnp.float32)

    # pure-JAX reference (matches the torch forward)
    w1, b1, w2, b2, w3, b3 = params
    cat = jnp.concatenate([x, a], axis=1)
    h1 = jnp.maximum(cat @ w1 + b1, 0.0)
    h2 = jnp.maximum(h1 @ w2 + b2, 0.0)
    q_ref = h2 @ w3 + b3

    # f32 matmul path: tight tolerance vs reference.
    q = qvalue_forward(x, a, params)
    jax.block_until_ready(q)
    assert q.shape == (batch, 1)
    assert jnp.allclose(q, q_ref, atol=1e-5, rtol=1e-5)

    # bf16 matmul-operand path (v6e/v7x MXU fast path): looser tolerance.
    q_bf16 = qvalue_forward(x, a, params, matmul_dtype=jnp.bfloat16)
    jax.block_until_ready(q_bf16)
    assert q_bf16.shape == (batch, 1)
    assert jnp.allclose(q_bf16, q_ref, atol=5e-2, rtol=5e-2)

    print("KERNEL_OK")
</pallas_src>

<mosaic_0001>
module attributes {stable_mosaic.version = 11 : i64} {
  func.func @_qvalue_kernel(%arg0: i32, %arg1: memref<8x4xf32, #tpu.memory_space<vmem>>, %arg2: memref<8x2xf32, #tpu.memory_space<vmem>>, %arg3: memref<4x32xf32, #tpu.memory_space<vmem>>, %arg4: memref<2x32xf32, #tpu.memory_space<vmem>>, %arg5: memref<1x32xf32, #tpu.memory_space<vmem>>, %arg6: memref<32x32xf32, #tpu.memory_space<vmem>>, %arg7: memref<1x32xf32, #tpu.memory_space<vmem>>, %arg8: memref<1x32xf32, #tpu.memory_space<vmem>>, %arg9: memref<1x1xf32, #tpu.memory_space<smem>>, %arg10: memref<8x1xf32, #tpu.memory_space<vmem>>) attributes {dimension_semantics = [#tpu.dimension_semantics<parallel>], iteration_bounds = array<i64: 1>, scalar_prefetch = 0 : i64, scratch_operands = 0 : i64, tpu.core_type = #tpu.core_type<tc>, window_params = [{transform_indices = @transform_0, window_bounds = array<i64: 8, 4>}, {transform_indices = @transform_1, window_bounds = array<i64: 8, 2>}, {pipeline_mode = #tpu.pipeline_mode<synchronous>, transform_indices = @transform_2, window_bounds = array<i64: 4, 32>}, {pipeline_mode = #tpu.pipeline_mode<synchronous>, transform_indices = @transform_3, window_bounds = array<i64: 2, 32>}, {pipeline_mode = #tpu.pipeline_mode<synchronous>, transform_indices = @transform_4, window_bounds = array<i64: 1, 32>}, {pipeline_mode = #tpu.pipeline_mode<synchronous>, transform_indices = @transform_5, window_bounds = array<i64: 32, 32>}, {pipeline_mode = #tpu.pipeline_mode<synchronous>, transform_indices = @transform_6, window_bounds = array<i64: 1, 32>}, {pipeline_mode = #tpu.pipeline_mode<synchronous>, transform_indices = @transform_7, window_bounds = array<i64: 1, 32>}, {transform_indices = @transform_8, window_bounds = array<i64: 1, 1>}, {transform_indices = @transform_9, window_bounds = array<i64: 8, 1>}]} {
    %c0 = arith.constant 0 : index
    %c0_0 = arith.constant 0 : index
    %0 = vector.load %arg1[%c0, %c0_0] : memref<8x4xf32, #tpu.memory_space<vmem>>, vector<8x4xf32>
    %c0_1 = arith.constant 0 : index
    %c0_2 = arith.constant 0 : index
    %1 = vector.load %arg2[%c0_1, %c0_2] : memref<8x2xf32, #tpu.memory_space<vmem>>, vector<8x2xf32>
    %c0_3 = arith.constant 0 : index
    %c0_4 = arith.constant 0 : index
    %2 = vector.load %arg3[%c0_3, %c0_4] : memref<4x32xf32, #tpu.memory_space<vmem>>, vector<4x32xf32>
    %cst = arith.constant dense<0.000000e+00> : vector<8x32xf32>
    %3 = tpu.matmul %0, %2, %cst {dimension_numbers = #tpu.dot_dimension_numbers<[1], [0], [0], [1], [0, 0, 1, 1], [], []>} : vector<8x4xf32>, vector<4x32xf32>, vector<8x32xf32> -> vector<8x32xf32>
    %c0_5 = arith.constant 0 : index
    %c0_6 = arith.constant 0 : index
    %4 = vector.load %arg4[%c0_5, %c0_6] : memref<2x32xf32, #tpu.memory_space<vmem>>, vector<2x32xf32>
    %cst_7 = arith.constant dense<0.000000e+00> : vector<8x32xf32>
    %5 = tpu.matmul %1, %4, %cst_7 {dimension_numbers = #tpu.dot_dimension_numbers<[1], [0], [0], [1], [0, 0, 1, 1], [], []>} : vector<8x2xf32>, vector<2x32xf32>, vector<8x32xf32> -> vector<8x32xf32>
    %6 = arith.addf %3, %5 : vector<8x32xf32>
    %c0_8 = arith.constant 0 : index
    %c0_9 = arith.constant 0 : index
    %7 = vector.load %arg5[%c0_8, %c0_9] : memref<1x32xf32, #tpu.memory_space<vmem>>, vector<1x32xf32>
    %8 = vector.broadcast %7 : vector<1x32xf32> to vector<8x32xf32>
    %9 = arith.addf %6, %8 : vector<8x32xf32>
    %cst_10 = arith.constant 0.000000e+00 : f32
    %10 = vector.broadcast %cst_10 : f32 to vector<8x32xf32>
    %11 = arith.maximumf %9, %10 : vector<8x32xf32>
    %c0_11 = arith.constant 0 : index
    %c0_12 = arith.constant 0 : index
    %12 = vector.load %arg6[%c0_11, %c0_12] : memref<32x32xf32, #tpu.memory_space<vmem>>, vector<32x32xf32>
    %cst_13 = arith.constant dense<0.000000e+00> : vector<8x32xf32>
    %13 = tpu.matmul %11, %12, %cst_13 {dimension_numbers = #tpu.dot_dimension_numbers<[1], [0], [0], [1], [0, 0, 1, 1], [], []>} : vector<8x32xf32>, vector<32x32xf32>, vector<8x32xf32> -> vector<8x32xf32>
    %c0_14 = arith.constant 0 : index
    %c0_15 = arith.constant 0 : index
    %14 = vector.load %arg7[%c0_14, %c0_15] : memref<1x32xf32, #tpu.memory_space<vmem>>, vector<1x32xf32>
    %15 = vector.broadcast %14 : vector<1x32xf32> to vector<8x32xf32>
    %16 = arith.addf %13, %15 : vector<8x32xf32>
    %cst_16 = arith.constant 0.000000e+00 : f32
    %17 = vector.broadcast %cst_16 : f32 to vector<8x32xf32>
    %18 = arith.maximumf %16, %17 : vector<8x32xf32>
    %c0_17 = arith.constant 0 : index
    %c0_18 = arith.constant 0 : index
    %19 = vector.load %arg8[%c0_17, %c0_18] : memref<1x32xf32, #tpu.memory_space<vmem>>, vector<1x32xf32>
    %20 = vector.broadcast %19 : vector<1x32xf32> to vector<8x32xf32>
    %21 = arith.mulf %18, %20 : vector<8x32xf32>
    %cst_19 = arith.constant dense<0.000000e+00> : vector<8xf32>
    %22 = vector.multi_reduction <add>, %21, %cst_19 [1] : vector<8x32xf32> to vector<8xf32>
    %23 = vector.shape_cast %22 : vector<8xf32> to vector<8x1xf32>
    %c0_20 = arith.constant 0 : index
    %c0_21 = arith.constant 0 : index
    %24 = memref.load %arg9[%c0_20, %c0_21] : memref<1x1xf32, #tpu.memory_space<smem>>
    %25 = vector.broadcast %24 : f32 to vector<8x1xf32>
    %26 = arith.addf %23, %25 : vector<8x1xf32>
    %c0_22 = arith.constant 0 : index
    %c0_23 = arith.constant 0 : index
    %27 = vector.load %arg10[%c0_22, %c0_23] : memref<8x1xf32, #tpu.memory_space<vmem>>, vector<8x1xf32>
    tpu.vector_store %arg10[%c0_22, %c0_23], %26 {strides = array<i32>} : memref<8x1xf32, #tpu.memory_space<vmem>>, vector<8x1xf32>,
    return
  }
  func.func @transform_0(%arg0: i32) -> (i32, i32) {
    %c0_i32 = arith.constant 0 : i32
    %c0_i32_0 = arith.constant 0 : i32
    return %arg0, %c0_i32 : i32, i32
  }
  func.func @transform_1(%arg0: i32) -> (i32, i32) {
    %c0_i32 = arith.constant 0 : i32
    %c0_i32_0 = arith.constant 0 : i32
    return %arg0, %c0_i32 : i32, i32
  }
  func.func @transform_2(%arg0: i32) -> (i32, i32) {
    %c0_i32 = arith.constant 0 : i32
    %c0_i32_0 = arith.constant 0 : i32
    %c0_i32_1 = arith.constant 0 : i32
    return %c0_i32, %c0_i32_0 : i32, i32
  }
  func.func @transform_3(%arg0: i32) -> (i32, i32) {
    %c0_i32 = arith.constant 0 : i32
    %c0_i32_0 = arith.constant 0 : i32
    %c0_i32_1 = arith.constant 0 : i32
    return %c0_i32, %c0_i32_0 : i32, i32
  }
  func.func @transform_4(%arg0: i32) -> (i32, i32) {
    %c0_i32 = arith.constant 0 : i32
    %c0_i32_0 = arith.constant 0 : i32
    %c0_i32_1 = arith.constant 0 : i32
    return %c0_i32, %c0_i32_0 : i32, i32
  }
  func.func @transform_5(%arg0: i32) -> (i32, i32) {
    %c0_i32 = arith.constant 0 : i32
    %c0_i32_0 = arith.constant 0 : i32
    %c0_i32_1 = arith.constant 0 : i32
    return %c0_i32, %c0_i32_0 : i32, i32
  }
  func.func @transform_6(%arg0: i32) -> (i32, i32) {
    %c0_i32 = arith.constant 0 : i32
    %c0_i32_0 = arith.constant 0 : i32
    %c0_i32_1 = arith.constant 0 : i32
    return %c0_i32, %c0_i32_0 : i32, i32
  }
  func.func @transform_7(%arg0: i32) -> (i32, i32) {
    %c0_i32 = arith.constant 0 : i32
    %c0_i32_0 = arith.constant 0 : i32
    %c0_i32_1 = arith.constant 0 : i32
    return %c0_i32, %c0_i32_0 : i32, i32
  }
  func.func @transform_8(%arg0: i32) -> (i32, i32) {
    %c0_i32 = arith.constant 0 : i32
    %c0_i32_0 = arith.constant 0 : i32
    %c0_i32_1 = arith.constant 0 : i32
    return %c0_i32, %c0_i32_0 : i32, i32
  }
  func.func @transform_9(%arg0: i32) -> (i32, i32) {
    %c0_i32 = arith.constant 0 : i32
    %c0_i32_0 = arith.constant 0 : i32
    return %arg0, %c0_i32 : i32, i32
  }
}

</mosaic_0001>

<llo_original>
// kernel: tpu_custom_call.1
$region0: #{tpu_custom_call.1}
  #allocation0 [shape = 'u32[]', space=smem, size = 0x4, offset = 0x4, fixed_abs, tag = 'smem constant byte address 0x4 - core index']
  #allocation1 [shape = 'u32[144,128]{1,0:T(1,128)}', space=vmem, size = 0x12000, scoped, tag = 'internal scratch']
  #allocation2 [shape = 'f32[1,1]{1,0:T(1,128)S(6)}', space=smem, size = 0x200, scoped, tag = 'scoped memory for tpu_custom_call.1']
  %s0 = inlined_call_operand.vmem [shape: f32[8,4], index: 0, kind: input, shape index: {}]
  %s1 = inlined_call_operand.vmem [shape: f32[8,2], index: 1, kind: input, shape index: {}]
  %s2 = inlined_call_operand.vmem [shape: f32[4,32], index: 2, kind: input, shape index: {}]
  %s3 = inlined_call_operand.vmem [shape: f32[2,32], index: 3, kind: input, shape index: {}]
  %s4 = inlined_call_operand.vmem [shape: f32[1,32], index: 4, kind: input, shape index: {}]
  %s5 = inlined_call_operand.vmem [shape: f32[32,32], index: 5, kind: input, shape index: {}]
  %s6 = inlined_call_operand.vmem [shape: f32[1,32], index: 6, kind: input, shape index: {}]
  %s7 = inlined_call_operand.vmem [shape: f32[1,32], index: 7, kind: input, shape index: {}]
  %s8 = inlined_call_operand.<no memory space> [shape: f32[1,1], index: 8, kind: input, shape index: {}]
  %s9 = inlined_call_operand.vmem [shape: f32[8,1], index: 9, kind: output, shape index: {}]
  %s10 = sld [smem:[#allocation0]]
  $region46: #{tpu_custom_call.1} parent=0
    _
  %s12 = ssub.s32 1, %s10
  %s13 = scalar_select 0, %s12, %s10
  %14 = sst [smem:[#allocation2]] %s8
  // Predicated region
  $region2: #{tpu_custom_call.1} parent=0 // pred_check
    _
  $region3: #{tpu_custom_call.1} parent=0 // pred_check_branch
    %16 = sbr.rel (0) target = $region5
  $region4: #{tpu_custom_call.1} parent=0 // pred_region
    _
  $region5: #{tpu_custom_call.1} parent=0 // pred_fallthru
    _
  // Predicated region
  $region6: #{tpu_custom_call.1} parent=0 // pred_check
    _
  $region7: #{tpu_custom_call.1} parent=0 // pred_check_branch
    %18 = sbr.rel (0) target = $region9
  $region8: #{tpu_custom_call.1} parent=0 // pred_region
    _
  $region9: #{tpu_custom_call.1} parent=0 // pred_fallthru
    _
  // Predicated region
  $region10: #{tpu_custom_call.1} parent=0 // pred_check
    _
  $region11: #{tpu_custom_call.1} parent=0 // pred_check_branch
    %20 = sbr.rel (0) target = $region13
  $region12: #{tpu_custom_call.1} parent=0 // pred_region
    _
  $region13: #{tpu_custom_call.1} parent=0 // pred_fallthru
    _
  // Predicated region
  $region14: #{tpu_custom_call.1} parent=0 // pred_check
    _
  $region15: #{tpu_custom_call.1} parent=0 // pred_check_branch
    %22 = sbr.rel (0) target = $region17
  $region16: #{tpu_custom_call.1} parent=0 // pred_region
    _
  $region17: #{tpu_custom_call.1} parent=0 // pred_fallthru
    _
  // Predicated region
  $region18: #{tpu_custom_call.1} parent=0 // pred_check
    _
  $region19: #{tpu_custom_call.1} parent=0 // pred_check_branch
    %24 = sbr.rel (0) target = $region21
  $region20: #{tpu_custom_call.1} parent=0 // pred_region
    _
  $region21: #{tpu_custom_call.1} parent=0 // pred_fallthru
    _
  // Predicated region
  $region22: #{tpu_custom_call.1} parent=0 // pred_check
    _
  $region23: #{tpu_custom_call.1} parent=0 // pred_check_branch
    %26 = sbr.rel (0) target = $region25
  $region24: #{tpu_custom_call.1} parent=0 // pred_region
    _
  $region25: #{tpu_custom_call.1} parent=0 // pred_fallthru
    _
  // Predicated region
  $region26: #{tpu_custom_call.1} parent=0 // pred_check
    _
  $region27: #{tpu_custom_call.1} parent=0 // pred_check_branch
    %28 = sbr.rel (0) target = $region29
  $region28: #{tpu_custom_call.1} parent=0 // pred_region
    _
  $region29: #{tpu_custom_call.1} parent=0 // pred_fallthru
    _
  // Predicated region
  $region30: #{tpu_custom_call.1} parent=0 // pred_check
    _
  $region31: #{tpu_custom_call.1} parent=0 // pred_check_branch
    %30 = sbr.rel (0) target = $region33
  $region32: #{tpu_custom_call.1} parent=0 // pred_region
    _
  $region33: #{tpu_custom_call.1} parent=0 // pred_fallthru
    _
  // Predicated region
  $region34: #{tpu_custom_call.1} parent=0 // pred_check
    _
  $region35: #{tpu_custom_call.1} parent=0 // pred_check_branch
    %32 = sbr.rel (0) target = $region37
  $region36: #{tpu_custom_call.1} parent=0 // pred_region
    _
  $region37: #{tpu_custom_call.1} parent=0 // pred_fallthru
    _
  %v33 = vld [vmem:[%s0] sm:$0xff]
  %v34 = vld [vmem:[%s1] sm:$0xff]
  %v35 = vld [vmem:[%s2] sm:$0xf]
  %v36 = vld [vmem:[%s3] sm:$0x3]
  %vm37 = vcmask 15360
  %v39 = vsel %vm37, %v34, 0
  %vm41 = vcmask 1041408
  %v43 = vsel %vm41, %v36, 0
  %45 = vmatprep.subr.mxu0 0.0
  %46 = vmatpush1.msra.mxu0 %v43
  %47 = vmatprep.subr.mxu0 0.0
  %48 = vmatpush1.msra.mxu0 0.0
  %49 = vmatprep.subr.mxu0 0.0
  %50 = vmatpush1.msra.mxu0 0.0
  %51 = vmatprep.subr.mxu0 0.0
  %52 = vmatpush1.msra.mxu0 0.0
  %53 = vmatprep.subr.mxu0 0.0
  %54 = vmatpush1.msra.mxu0 0.0
  %55 = vmatprep.subr.mxu0 0.0
  %56 = vmatpush1.msra.mxu0 0.0
  %57 = vmatprep.subr.mxu0 0.0
  %58 = vmatpush1.msra.mxu0 0.0
  %59 = vmatprep.subr.mxu0 0.0
  %60 = vmatpush1.msra.mxu0 0.0
  %61 = vmatprep.subr.mxu0 0.0
  %62 = vmatpush1.msra.mxu0 0.0
  %63 = vmatprep.subr.mxu0 0.0
  %64 = vmatpush1.msra.mxu0 0.0
  %65 = vmatprep.subr.mxu0 0.0
  %66 = vmatpush1.msra.mxu0 0.0
  %67 = vmatprep.subr.mxu0 0.0
  %68 = vmatpush1.msra.mxu0 0.0
  %69 = vmatprep.subr.mxu0 0.0
  %70 = vmatpush1.msra.mxu0 0.0
  %71 = vmatprep.subr.mxu0 0.0
  %72 = vmatpush1.msra.mxu0 0.0
  %73 = vmatprep.subr.mxu0 0.0
  %74 = vmatpush1.msra.mxu0 0.0
  %75 = vmatprep.subr.mxu0 0.0
  %76 = vmatpush1.msra.mxu0 0.0
  %77 = vmatprep.subr.mxu0 0.0
  %78 = vmatpush1.msra.mxu0 0.0
  %79 = vmatprep.subr.mxu0 0.0
  %80 = vmatpush1.msra.mxu0 0.0
  %81 = vmatprep.subr.mxu0 0.0
  %82 = vmatpush1.msra.mxu0 0.0
  %83 = vmatprep.subr.mxu0 0.0
  %84 = vmatpush1.msra.mxu0 0.0
  %85 = vmatprep.subr.mxu0 0.0
  %86 = vmatpush1.msra.mxu0 0.0
  %87 = vmatprep.subr.mxu0 0.0
  %88 = vmatpush1.msra.mxu0 0.0
  %89 = vmatprep.subr.mxu0 0.0
  %90 = vmatpush1.msra.mxu0 0.0
  %91 = vmatprep.subr.mxu0 0.0
  %92 = vmatpush1.msra.mxu0 0.0
  %93 = vmatprep.subr.mxu0 0.0
  %94 = vmatpush1.msra.mxu0 0.0
  %95 = vmatprep.subr.mxu0 0.0
  %96 = vmatpush1.msra.mxu0 0.0
  %97 = vmatprep.subr.mxu0 0.0
  %98 = vmatpush1.msra.mxu0 0.0
  %99 = vmatprep.subr.mxu0 0.0
  %100 = vmatpush1.msra.mxu0 0.0
  %101 = vmatprep.subr.mxu0 0.0
  %102 = vmatpush1.msra.mxu0 0.0
  %103 = vmatprep.subr.mxu0 0.0
  %104 = vmatpush1.msra.mxu0 0.0
  %105 = vmatprep.subr.mxu0 0.0
  %106 = vmatpush1.msra.mxu0 0.0
  %107 = vmatprep.subr.mxu0 0.0
  %108 = vmatpush1.msra.mxu0 0.0
  %109 = vmatprep.mubr.f32.mxu0 0.0
  %110 = vmatmul.mubr.f32.gmra.mrb[0].mxu0 %v39
  %v111 = vpop.f32.mrb[0].mxu0
  %v112 = vadd.f32 0.0, %v111
  %v113 = vpop.f32.mrb[0].mxu0
  %114 = vdwg.mxu0
  %vm115 = vcmask 31744
  %v117 = vsel %vm115, %v33, 0
  %vm119 = vcmask 1043456
  %v121 = vsel %vm119, %v35, 0
  %123 = vmatprep.subr.mxu0 0.0
  %124 = vmatpush1.msra.mxu0 %v121
  %125 = vmatprep.subr.mxu0 0.0
  %126 = vmatpush1.msra.mxu0 0.0
  %127 = vmatprep.subr.mxu0 0.0
  %128 = vmatpush1.msra.mxu0 0.0
  %129 = vmatprep.subr.mxu0 0.0
  %130 = vmatpush1.msra.mxu0 0.0
  %131 = vmatprep.subr.mxu0 0.0
  %132 = vmatpush1.msra.mxu0 0.0
  %133 = vmatprep.subr.mxu0 0.0
  %134 = vmatpush1.msra.mxu0 0.0
  %135 = vmatprep.subr.mxu0 0.0
  %136 = vmatpush1.msra.mxu0 0.0
  %137 = vmatprep.subr.mxu0 0.0
  %138 = vmatpush1.msra.mxu0 0.0
  %139 = vmatprep.subr.mxu0 0.0
  %140 = vmatpush1.msra.mxu0 0.0
  %141 = vmatprep.subr.mxu0 0.0
  %142 = vmatpush1.msra.mxu0 0.0
  %143 = vmatprep.subr.mxu0 0.0
  %144 = vmatpush1.msra.mxu0 0.0
  %145 = vmatprep.subr.mxu0 0.0
  %146 = vmatpush1.msra.mxu0 0.0
  %147 = vmatprep.subr.mxu0 0.0
  %148 = vmatpush1.msra.mxu0 0.0
  %149 = vmatprep.subr.mxu0 0.0
  %150 = vmatpush1.msra.mxu0 0.0
  %151 = vmatprep.subr.mxu0 0.0
  %152 = vmatpush1.msra.mxu0 0.0
  %153 = vmatprep.subr.mxu0 0.0
  %154 = vmatpush1.msra.mxu0 0.0
  %155 = vmatprep.subr.mxu0 0.0
  %156 = vmatpush1.msra.mxu0 0.0
  %157 = vmatprep.subr.mxu0 0.0
  %158 = vmatpush1.msra.mxu0 0.0
  %159 = vmatprep.subr.mxu0 0.0
  %160 = vmatpush1.msra.mxu0 0.0
  %161 = vmatprep.subr.mxu0 0.0
  %162 = vmatpush1.msra.mxu0 0.0
  %163 = vmatprep.subr.mxu0 0.0
  %164 = vmatpush1.msra.mxu0 0.0
  %165 = vmatprep.subr.mxu0 0.0
  %166 = vmatpush1.msra.mxu0 0.0
  %167 = vmatprep.subr.mxu0 0.0
  %168 = vmatpush1.msra.mxu0 0.0
  %169 = vmatprep.subr.mxu0 0.0
  %170 = vmatpush1.msra.mxu0 0.0
  %171 = vmatprep.subr.mxu0 0.0
  %172 = vmatpush1.msra.mxu0 0.0
  %173 = vmatprep.subr.mxu0 0.0
  %174 = vmatpush1.msra.mxu0 0.0
  %175 = vmatprep.subr.mxu0 0.0
  %176 = vmatpush1.msra.mxu0 0.0
  %177 = vmatprep.subr.mxu0 0.0
  %178 = vmatpush1.msra.mxu0 0.0
  %179 = vmatprep.subr.mxu0 0.0
  %180 = vmatpush1.msra.mxu0 0.0
  %181 = vmatprep.subr.mxu0 0.0
  %182 = vmatpush1.msra.mxu0 0.0
  %183 = vmatprep.subr.mxu0 0.0
  %184 = vmatpush1.msra.mxu0 0.0
  %185 = vmatprep.subr.mxu0 0.0
  %186 = vmatpush1.msra.mxu0 0.0
  %187 = vmatprep.mubr.f32.mxu0 0.0
  %188 = vmatmul.mubr.f32.gmra.mrb[0].mxu0 %v117
  %v189 = vpop.f32.mrb[0].mxu0
  %v190 = vadd.f32 %v112, %v189
  %v191 = vpop.f32.mrb[0].mxu0
  %192 = vdwg.mxu0
  %v193 = vld [vmem:[%s4] sm:$0x1]
  %v195 = vlaneseq
  %v196 = vshrl.u32 %v195, 7
  %v197 = vsub.s32 0, %v196
  %v198 = vrot.slane %v193, %v197
  %v200 = vadd.f32 %v190, %v198
  %v201 = vmax.f32 %v200, 0.0
  %v202 = vld [vmem:[%s5] sm:$0xff]
  %v203 = vld [vmem:[%s5 + $0x8] sm:$0xff]
  %v204 = vld [vmem:[%s5 + $0x10] sm:$0xff]
  %v205 = vld [vmem:[%s5 + $0x18] sm:$0xff]
  %v206 = vld [vmem:[%s6] sm:$0x1]
  %v208 = vlaneseq
  %v209 = vshrl.u32 %v208, 7
  %v210 = vsub.s32 0, %v209
  %v211 = vrot.slane %v206, %v210
  %vm213 = vcmask 261120
  %v215 = vsel %vm213, %v201, 0
  %217 = vmatprep.subr.mxu0 0.0
  %218 = vmatpush1.msra.mxu0 %v202
  %219 = vmatprep.subr.mxu0 0.0
  %220 = vmatpush1.msra.mxu0 %v203
  %221 = vmatprep.subr.mxu0 0.0
  %222 = vmatpush1.msra.mxu0 %v204
  %223 = vmatprep.subr.mxu0 0.0
  %224 = vmatpush1.msra.mxu0 %v205
  %225 = vmatprep.subr.mxu0 0.0
  %226 = vmatpush1.msra.mxu0 0.0
  %227 = vmatprep.subr.mxu0 0.0
  %228 = vmatpush1.msra.mxu0 0.0
  %229 = vmatprep.subr.mxu0 0.0
  %230 = vmatpush1.msra.mxu0 0.0
  %231 = vmatprep.subr.mxu0 0.0
  %232 = vmatpush1.msra.mxu0 0.0
  %233 = vmatprep.subr.mxu0 0.0
  %234 = vmatpush1.msra.mxu0 0.0
  %235 = vmatprep.subr.mxu0 0.0
  %236 = vmatpush1.msra.mxu0 0.0
  %237 = vmatprep.subr.mxu0 0.0
  %238 = vmatpush1.msra.mxu0 0.0
  %239 = vmatprep.subr.mxu0 0.0
  %240 = vmatpush1.msra.mxu0 0.0
  %241 = vmatprep.subr.mxu0 0.0
  %242 = vmatpush1.msra.mxu0 0.0
  %243 = vmatprep.subr.mxu0 0.0
  %244 = vmatpush1.msra.mxu0 0.0
  %245 = vmatprep.subr.mxu0 0.0
  %246 = vmatpush1.msra.mxu0 0.0
  %247 = vmatprep.subr.mxu0 0.0
  %248 = vmatpush1.msra.mxu0 0.0
  %249 = vmatprep.subr.mxu0 0.0
  %250 = vmatpush1.msra.mxu0 0.0
  %251 = vmatprep.subr.mxu0 0.0
  %252 = vmatpush1.msra.mxu0 0.0
  %253 = vmatprep.subr.mxu0 0.0
  %254 = vmatpush1.msra.mxu0 0.0
  %255 = vmatprep.subr.mxu0 0.0
  %256 = vmatpush1.msra.mxu0 0.0
  %257 = vmatprep.subr.mxu0 0.0
  %258 = vmatpush1.msra.mxu0 0.0
  %259 = vmatprep.subr.mxu0 0.0
  %260 = vmatpush1.msra.mxu0 0.0
  %261 = vmatprep.subr.mxu0 0.0
  %262 = vmatpush1.msra.mxu0 0.0
  %263 = vmatprep.subr.mxu0 0.0
  %264 = vmatpush1.msra.mxu0 0.0
  %265 = vmatprep.subr.mxu0 0.0
  %266 = vmatpush1.msra.mxu0 0.0
  %267 = vmatprep.subr.mxu0 0.0
  %268 = vmatpush1.msra.mxu0 0.0
  %269 = vmatprep.subr.mxu0 0.0
  %270 = vmatpush1.msra.mxu0 0.0
  %271 = vmatprep.subr.mxu0 0.0
  %272 = vmatpush1.msra.mxu0 0.0
  %273 = vmatprep.subr.mxu0 0.0
  %274 = vmatpush1.msra.mxu0 0.0
  %275 = vmatprep.subr.mxu0 0.0
  %276 = vmatpush1.msra.mxu0 0.0
  %277 = vmatprep.subr.mxu0 0.0
  %278 = vmatpush1.msra.mxu0 0.0
  %279 = vmatprep.subr.mxu0 0.0
  %280 = vmatpush1.msra.mxu0 0.0
  %281 = vmatprep.mubr.f32.mxu0 0.0
  %282 = vmatmul.mubr.f32.gmra.mrb[0].mxu0 %v215
  %v283 = vpop.f32.mrb[0].mxu0
  %v284 = vadd.f32 %v211, %v283
  %v285 = vpop.f32.mrb[0].mxu0
  %286 = vdwg.mxu0
  %v287 = vmax.f32 %v284, 0.0
  %v288 = vld [vmem:[%s7] sm:$0x1]
  %v290 = vlaneseq
  %v291 = vshrl.u32 %v290, 7
  %v292 = vsub.s32 0, %v291
  %v293 = vrot.slane %v288, %v292
  %v295 = vmul.f32 %v287, %v293
  %v296 = vsel %vm213, %v295, 0.0
  %297 = vadd.xlane.f32.xlu0 %v296
  %v298 = vpop.xlane.xlu0 %297
  %s299 = sld [smem:[#allocation2]]
  %v300 = vstv %s299
  %v301 = vadd.f32 %v298, %v300
  %vm302 = vcmask 7168
  %303 = vst.msk [vmem:[%s9] sm:$0xff] %vm302, %v301
  // Predicated region
  $region38: #{tpu_custom_call.1} parent=0 // pred_check
    _
  $region39: #{tpu_custom_call.1} parent=0 // pred_check_branch
    %305 = sbr.rel (0) target = $region41
  $region40: #{tpu_custom_call.1} parent=0 // pred_region
    _
  $region41: #{tpu_custom_call.1} parent=0 // pred_fallthru
    _
  // Predicated region
  $region42: #{tpu_custom_call.1} parent=0 // pred_check
    _
  $region43: #{tpu_custom_call.1} parent=0 // pred_check_branch
    %307 = sbr.rel (0) target = $region45
  $region44: #{tpu_custom_call.1} parent=0 // pred_region
    _
  $region45: #{tpu_custom_call.1} parent=0 // pred_fallthru
    _

</llo_original>
